<compile_context>
chip_gen: v7x
topology: tpu7x:2x2x1
jax: 0.10.0
libtpu: 0.0.40
codegen_flags: <defaults>
</compile_context>

<pallas_src>
import functools

import jax
import jax.numpy as jnp
from jax.experimental import pallas as pl
from jax.experimental.pallas import tpu as pltpu


def _block_kernel(x_ref, dww_ref, dwb_ref, pwt_ref, pwb_ref, edge_ref,
                  o_ref, pad_ref, acc_ref, *, W, margin, C, G):
    """One group of G batch images in flattened-spatial layout.

    x_ref:    (R, HW)             R = G*C rows (batch-major, channel-minor)
    dww_ref:  (9, R, 1)           depthwise 3x3 weights (tiled over G), tap = ki*3 + kj
    dwb_ref:  (R, 1)              depthwise bias (tiled over G)
    pwt_ref:  (C, Cout, 1)        pointwise weights, [c, co, 0] = pw_w[c, co]
    pwb_ref:  (Cout, 1)           pointwise bias
    edge_ref: (2, 1, HW)          0/1 masks: [0]="w-1 inside row", [1]="w+1 inside row"
    o_ref:    (G*Cout, HW)        output rows (batch-major, channel-minor)
    pad_ref:  (R, HW + 2*margin)  f32 scratch; zero flat margins emulate zero padding
    acc_ref:  (R, HW)             f32 scratch holding the depthwise-conv output
    """
    R, HW = x_ref.shape
    Cout = o_ref.shape[0] // G
    M = margin

    x = x_ref[...].astype(jnp.float32)

    # Zero flat margins and write the images into the centre of the padded rows.
    # (Redone every grid step so the batch-group axis stays truly "parallel".)
    pad_ref[:, 0:M] = jnp.zeros((R, M), jnp.float32)
    pad_ref[:, M + HW:M + HW + M] = jnp.zeros((R, M), jnp.float32)
    pad_ref[:, M:M + HW] = x

    mask_l = edge_ref[0].astype(jnp.float32)    # (1, HW): left neighbour valid
    mask_r = edge_ref[1].astype(jnp.float32)    # (1, HW): right neighbour valid

    # Depthwise 3x3: nine statically shifted slices of the padded flat rows (VPU).
    # Out-of-image reads in the H direction land in the zero margins; the W-direction
    # wrap-around is killed by the edge masks.  Lane shifts only mix pixels within the
    # same (batch, channel) row, so batch packing cannot cross-contaminate images.
    acc = jnp.broadcast_to(dwb_ref[...].astype(jnp.float32), (R, HW))
    for ki in range(3):
        for kj in range(3):
            di, dj = ki - 1, kj - 1
            d = di * W + dj
            tap = x if d == 0 else pad_ref[:, M + d:M + d + HW]    # (R, HW)
            if dj == -1:
                tap = tap * mask_l
            elif dj == 1:
                tap = tap * mask_r
            acc = acc + tap * dww_ref[ki * 3 + kj].astype(jnp.float32)   # (R,1) bcast
    acc_ref[...] = acc

    # Pointwise 1x1 conv, unrolled on the VPU (tiny C/Cout -> MXU would be idle),
    # followed by the identity shortcut (stride=1, Cin == Cout) + ReLU.
    pwb = pwb_ref[...].astype(jnp.float32)                         # (Cout, 1)
    for g in range(G):
        y = jnp.broadcast_to(pwb, (Cout, HW))
        for c in range(C):
            y = y + acc_ref[g * C + c:g * C + c + 1, :] * pwt_ref[c].astype(jnp.float32)
        res = x_ref[g * C:(g + 1) * C, :].astype(jnp.float32)      # same rows (C==Cout)
        o_ref[g * Cout:(g + 1) * Cout, :] = jnp.maximum(y + res, 0.0).astype(o_ref.dtype)


@jax.jit
def residual_dwsep_block(x_nchw, dw_w, dw_b, pw_w, pw_b):
    """x_nchw: (B, C, H, W); dw_w: (3,3,C); dw_b: (C,); pw_w: (C,Cout); pw_b: (Cout,)."""
    B, C, H, W = x_nchw.shape
    Cout = pw_w.shape[1]
    if Cout != C:
        # TODO(synk): the stride!=1 / Cin!=Cout shortcut of the reference module uses a
        # misspelled nn.BacthNorm2d and has no defined semantics to translate.
        raise ValueError("only the identity-shortcut path (Cin == Cout, stride=1) "
                         "of ResidualDepthwiseSeParableBlock is implemented")
    HW = H * W
    M = ((W + 1 + 127) // 128) * 128           # flat margin: lane-aligned, >= W+1

    # Pack G batch images per grid step so G*C >= 8 sublanes when possible (G | B).
    desired = max(1, -(-8 // C))
    G = max(g for g in range(1, min(desired, B) + 1) if B % g == 0)
    R = G * C
    nblk = B // G

    x3 = x_nchw.reshape(nblk, R, HW)            # free view: merges contiguous dims
    dww9 = jnp.tile(dw_w.reshape(9, C), (1, G))[:, :, None]   # (9, R, 1), tap = ki*3+kj
    dwb_t = jnp.tile(dw_b, G).reshape(R, 1)                   # (R, 1)
    pwt3 = pw_w[:, :, None]                                   # (C, Cout, 1)
    pwb = pw_b.reshape(Cout, 1)

    # 0/1 masks marking pixels whose left / right neighbour is inside the same row.
    w_ids = jnp.arange(HW, dtype=jnp.int32) % W
    edge_mask = jnp.stack([w_ids > 0, w_ids < W - 1]).astype(jnp.float32)[:, None, :]

    flops = B * HW * (2 * 9 * C + 2 * C * Cout + 3 * Cout)
    bytes_accessed = 4 * (B * C * HW + B * Cout * HW
                          + 9 * C + C + C * Cout + Cout + 2 * HW)

    kernel = functools.partial(_block_kernel, W=W, margin=M, C=C, G=G)
    out3 = pl.pallas_call(
        kernel,
        out_shape=jax.ShapeDtypeStruct((nblk, G * Cout, HW), x_nchw.dtype),
        grid_spec=pltpu.PrefetchScalarGridSpec(
            num_scalar_prefetch=0,
            grid=(nblk,),
            in_specs=[
                pl.BlockSpec((None, R, HW), lambda i: (i, 0, 0)),      # activations
                pl.BlockSpec((9, R, 1), lambda i: (0, 0, 0)),          # dw weights
                pl.BlockSpec((R, 1), lambda i: (0, 0)),                # dw bias
                pl.BlockSpec((C, Cout, 1), lambda i: (0, 0, 0)),       # pw weights
                pl.BlockSpec((Cout, 1), lambda i: (0, 0)),             # pw bias
                pl.BlockSpec((2, 1, HW), lambda i: (0, 0, 0)),         # edge masks
            ],
            out_specs=pl.BlockSpec((None, G * Cout, HW), lambda i: (i, 0, 0)),
            scratch_shapes=[
                pltpu.VMEM((R, HW + 2 * M), jnp.float32),   # zero-margin padded rows
                pltpu.VMEM((R, HW), jnp.float32),           # depthwise output
            ],
        ),
        compiler_params=pltpu.CompilerParams(
            dimension_semantics=("parallel",)),
        cost_estimate=pl.CostEstimate(
            flops=flops, transcendentals=0, bytes_accessed=bytes_accessed),
    )(x3, dww9, dwb_t, pwt3, pwb, edge_mask)

    return out3.reshape(B, Cout, H, W)


def _reference(x_nchw, dw_w, dw_b, pw_w, pw_b):
    """Pure-JAX NCHW reference matching PyTorch conv semantics."""
    C = x_nchw.shape[1]
    dw_kernel = jnp.transpose(dw_w, (2, 0, 1))[:, None, :, :]      # (C,1,3,3)
    y = jax.lax.conv_general_dilated(
        x_nchw, dw_kernel, window_strides=(1, 1), padding=((1, 1), (1, 1)),
        dimension_numbers=("NCHW", "OIHW", "NCHW"), feature_group_count=C)
    y = y + dw_b[None, :, None, None]
    pw_kernel = jnp.transpose(pw_w, (1, 0))[:, :, None, None]      # (Cout,C,1,1)
    y = jax.lax.conv_general_dilated(
        y, pw_kernel, window_strides=(1, 1), padding=((0, 0), (0, 0)),
        dimension_numbers=("NCHW", "OIHW", "NCHW"))
    y = y + pw_b[None, :, None, None]
    return jnp.maximum(y + x_nchw, 0.0)


if __name__ == "__main__":
    # Small shapes consistent with the module: stride=1, in_channels == out_channels.
    B, C, H, W = 2, 4, 16, 16
    Cout = C

    key = jax.random.PRNGKey(0)
    k_x, k_dw, k_dwb, k_pw, k_pwb = jax.random.split(key, 5)

    x = jax.random.normal(k_x, (B, C, H, W), jnp.float32)
    dw_w = jax.random.normal(k_dw, (3, 3, C), jnp.float32) * 0.2    # depthwise (kh,kw,C)
    dw_b = jax.random.normal(k_dwb, (C,), jnp.float32) * 0.1
    pw_w = jax.random.normal(k_pw, (C, Cout), jnp.float32) * 0.2    # pointwise (Cin,Cout)
    pw_b = jax.random.normal(k_pwb, (Cout,), jnp.float32) * 0.1

    out = residual_dwsep_block(x, dw_w, dw_b, pw_w, pw_b)
    out = jax.block_until_ready(out)

    ref = _reference(x, dw_w, dw_b, pw_w, pw_b)
    assert out.shape == (B, Cout, H, W)
    assert jnp.allclose(out, ref, atol=1e-4, rtol=1e-4), "mismatch vs reference"

    print("KERNEL_OK")
</pallas_src>

<mosaic_0001>
module attributes {stable_mosaic.version = 11 : i64} {
  func.func @_block_kernel(%arg0: i32, %arg1: memref<1x8x256xf32, #tpu.memory_space<vmem>>, %arg2: memref<9x8x1xf32, #tpu.memory_space<vmem>>, %arg3: memref<8x1xf32, #tpu.memory_space<vmem>>, %arg4: memref<4x4x1xf32, #tpu.memory_space<vmem>>, %arg5: memref<4x1xf32, #tpu.memory_space<vmem>>, %arg6: memref<2x1x256xf32, #tpu.memory_space<vmem>>, %arg7: memref<1x8x256xf32, #tpu.memory_space<vmem>>, %arg8: memref<8x512xf32, #tpu.memory_space<vmem>>, %arg9: memref<8x256xf32, #tpu.memory_space<vmem>>) attributes {dimension_semantics = [#tpu.dimension_semantics<parallel>], iteration_bounds = array<i64: 1>, scalar_prefetch = 0 : i64, scratch_operands = 2 : i64, tpu.core_type = #tpu.core_type<tc>, window_params = [{transform_indices = @transform_0, window_bounds = array<i64: 1, 8, 256>}, {pipeline_mode = #tpu.pipeline_mode<synchronous>, transform_indices = @transform_1, window_bounds = array<i64: 9, 8, 1>}, {pipeline_mode = #tpu.pipeline_mode<synchronous>, transform_indices = @transform_2, window_bounds = array<i64: 8, 1>}, {pipeline_mode = #tpu.pipeline_mode<synchronous>, transform_indices = @transform_3, window_bounds = array<i64: 4, 4, 1>}, {pipeline_mode = #tpu.pipeline_mode<synchronous>, transform_indices = @transform_4, window_bounds = array<i64: 4, 1>}, {pipeline_mode = #tpu.pipeline_mode<synchronous>, transform_indices = @transform_5, window_bounds = array<i64: 2, 1, 256>}, {transform_indices = @transform_6, window_bounds = array<i64: 1, 8, 256>}]} {
    %c0 = arith.constant 0 : index
    %c0_0 = arith.constant 0 : index
    %c0_1 = arith.constant 0 : index
    %0 = vector.load %arg1[%c0, %c0_0, %c0_1] : memref<1x8x256xf32, #tpu.memory_space<vmem>>, vector<1x8x256xf32>
    %1 = vector.shape_cast %0 : vector<1x8x256xf32> to vector<8x256xf32>
    %cst = arith.constant 0.000000e+00 : f32
    %2 = vector.broadcast %cst : f32 to vector<8x128xf32>
    %c0_2 = arith.constant 0 : index
    %c0_3 = arith.constant 0 : index
    %3 = vector.load %arg8[%c0_2, %c0_3] : memref<8x512xf32, #tpu.memory_space<vmem>>, vector<8x128xf32>
    tpu.vector_store %arg8[%c0_2, %c0_3], %2 {strides = array<i32>} : memref<8x512xf32, #tpu.memory_space<vmem>>, vector<8x128xf32>,
    %cst_4 = arith.constant 0.000000e+00 : f32
    %4 = vector.broadcast %cst_4 : f32 to vector<8x128xf32>
    %c0_5 = arith.constant 0 : index
    %c384 = arith.constant 384 : index
    %5 = vector.load %arg8[%c0_5, %c384] : memref<8x512xf32, #tpu.memory_space<vmem>>, vector<8x128xf32>
    tpu.vector_store %arg8[%c0_5, %c384], %4 {strides = array<i32>} : memref<8x512xf32, #tpu.memory_space<vmem>>, vector<8x128xf32>,
    %c0_6 = arith.constant 0 : index
    %c128 = arith.constant 128 : index
    %6 = vector.load %arg8[%c0_6, %c128] : memref<8x512xf32, #tpu.memory_space<vmem>>, vector<8x256xf32>
    tpu.vector_store %arg8[%c0_6, %c128], %1 {strides = array<i32>} : memref<8x512xf32, #tpu.memory_space<vmem>>, vector<8x256xf32>,
    %c0_7 = arith.constant 0 : index
    %c0_8 = arith.constant 0 : index
    %c0_9 = arith.constant 0 : index
    %7 = vector.load %arg6[%c0_7, %c0_8, %c0_9] : memref<2x1x256xf32, #tpu.memory_space<vmem>>, vector<1x1x256xf32>
    %8 = vector.shape_cast %7 : vector<1x1x256xf32> to vector<1x256xf32>
    %c1 = arith.constant 1 : index
    %c0_10 = arith.constant 0 : index
    %c0_11 = arith.constant 0 : index
    %9 = vector.load %arg6[%c1, %c0_10, %c0_11] : memref<2x1x256xf32, #tpu.memory_space<vmem>>, vector<1x1x256xf32>
    %10 = vector.shape_cast %9 : vector<1x1x256xf32> to vector<1x256xf32>
    %c0_12 = arith.constant 0 : index
    %c0_13 = arith.constant 0 : index
    %11 = vector.load %arg3[%c0_12, %c0_13] : memref<8x1xf32, #tpu.memory_space<vmem>>, vector<8x1xf32>
    %12 = vector.shape_cast %11 : vector<8x1xf32> to vector<8x1xf32>
    %13 = vector.broadcast %12 : vector<8x1xf32> to vector<8x256xf32>
    %c0_14 = arith.constant 0 : index
    %c111 = arith.constant 111 : index
    %14 = vector.load %arg8[%c0_14, %c111] : memref<8x512xf32, #tpu.memory_space<vmem>>, vector<8x256xf32>
    %15 = vector.broadcast %8 : vector<1x256xf32> to vector<8x256xf32>
    %16 = arith.mulf %14, %15 : vector<8x256xf32>
    %c0_15 = arith.constant 0 : index
    %c0_16 = arith.constant 0 : index
    %c0_17 = arith.constant 0 : index
    %17 = vector.load %arg2[%c0_15, %c0_16, %c0_17] : memref<9x8x1xf32, #tpu.memory_space<vmem>>, vector<1x8x1xf32>
    %18 = vector.shape_cast %17 : vector<1x8x1xf32> to vector<8x1xf32>
    %19 = vector.broadcast %18 : vector<8x1xf32> to vector<8x256xf32>
    %20 = arith.mulf %16, %19 : vector<8x256xf32>
    %21 = arith.addf %13, %20 : vector<8x256xf32>
    %c0_18 = arith.constant 0 : index
    %c112 = arith.constant 112 : index
    %22 = vector.load %arg8[%c0_18, %c112] : memref<8x512xf32, #tpu.memory_space<vmem>>, vector<8x256xf32>
    %c1_19 = arith.constant 1 : index
    %c0_20 = arith.constant 0 : index
    %c0_21 = arith.constant 0 : index
    %23 = vector.load %arg2[%c1_19, %c0_20, %c0_21] : memref<9x8x1xf32, #tpu.memory_space<vmem>>, vector<1x8x1xf32>
    %24 = vector.shape_cast %23 : vector<1x8x1xf32> to vector<8x1xf32>
    %25 = vector.broadcast %24 : vector<8x1xf32> to vector<8x256xf32>
    %26 = arith.mulf %22, %25 : vector<8x256xf32>
    %27 = arith.addf %21, %26 : vector<8x256xf32>
    %c0_22 = arith.constant 0 : index
    %c113 = arith.constant 113 : index
    %28 = vector.load %arg8[%c0_22, %c113] : memref<8x512xf32, #tpu.memory_space<vmem>>, vector<8x256xf32>
    %29 = vector.broadcast %10 : vector<1x256xf32> to vector<8x256xf32>
    %30 = arith.mulf %28, %29 : vector<8x256xf32>
    %c2 = arith.constant 2 : index
    %c0_23 = arith.constant 0 : index
    %c0_24 = arith.constant 0 : index
    %31 = vector.load %arg2[%c2, %c0_23, %c0_24] : memref<9x8x1xf32, #tpu.memory_space<vmem>>, vector<1x8x1xf32>
    %32 = vector.shape_cast %31 : vector<1x8x1xf32> to vector<8x1xf32>
    %33 = vector.broadcast %32 : vector<8x1xf32> to vector<8x256xf32>
    %34 = arith.mulf %30, %33 : vector<8x256xf32>
    %35 = arith.addf %27, %34 : vector<8x256xf32>
    %c0_25 = arith.constant 0 : index
    %c127 = arith.constant 127 : index
    %36 = vector.load %arg8[%c0_25, %c127] : memref<8x512xf32, #tpu.memory_space<vmem>>, vector<8x256xf32>
    %37 = vector.broadcast %8 : vector<1x256xf32> to vector<8x256xf32>
    %38 = arith.mulf %36, %37 : vector<8x256xf32>
    %c3 = arith.constant 3 : index
    %c0_26 = arith.constant 0 : index
    %c0_27 = arith.constant 0 : index
    %39 = vector.load %arg2[%c3, %c0_26, %c0_27] : memref<9x8x1xf32, #tpu.memory_space<vmem>>, vector<1x8x1xf32>
    %40 = vector.shape_cast %39 : vector<1x8x1xf32> to vector<8x1xf32>
    %41 = vector.broadcast %40 : vector<8x1xf32> to vector<8x256xf32>
    %42 = arith.mulf %38, %41 : vector<8x256xf32>
    %43 = arith.addf %35, %42 : vector<8x256xf32>
    %c4 = arith.constant 4 : index
    %c0_28 = arith.constant 0 : index
    %c0_29 = arith.constant 0 : index
    %44 = vector.load %arg2[%c4, %c0_28, %c0_29] : memref<9x8x1xf32, #tpu.memory_space<vmem>>, vector<1x8x1xf32>
    %45 = vector.shape_cast %44 : vector<1x8x1xf32> to vector<8x1xf32>
    %46 = vector.broadcast %45 : vector<8x1xf32> to vector<8x256xf32>
    %47 = arith.mulf %1, %46 : vector<8x256xf32>
    %48 = arith.addf %43, %47 : vector<8x256xf32>
    %c0_30 = arith.constant 0 : index
    %c129 = arith.constant 129 : index
    %49 = vector.load %arg8[%c0_30, %c129] : memref<8x512xf32, #tpu.memory_space<vmem>>, vector<8x256xf32>
    %50 = vector.broadcast %10 : vector<1x256xf32> to vector<8x256xf32>
    %51 = arith.mulf %49, %50 : vector<8x256xf32>
    %c5 = arith.constant 5 : index
    %c0_31 = arith.constant 0 : index
    %c0_32 = arith.constant 0 : index
    %52 = vector.load %arg2[%c5, %c0_31, %c0_32] : memref<9x8x1xf32, #tpu.memory_space<vmem>>, vector<1x8x1xf32>
    %53 = vector.shape_cast %52 : vector<1x8x1xf32> to vector<8x1xf32>
    %54 = vector.broadcast %53 : vector<8x1xf32> to vector<8x256xf32>
    %55 = arith.mulf %51, %54 : vector<8x256xf32>
    %56 = arith.addf %48, %55 : vector<8x256xf32>
    %c0_33 = arith.constant 0 : index
    %c143 = arith.constant 143 : index
    %57 = vector.load %arg8[%c0_33, %c143] : memref<8x512xf32, #tpu.memory_space<vmem>>, vector<8x256xf32>
    %58 = vector.broadcast %8 : vector<1x256xf32> to vector<8x256xf32>
    %59 = arith.mulf %57, %58 : vector<8x256xf32>
    %c6 = arith.constant 6 : index
    %c0_34 = arith.constant 0 : index
    %c0_35 = arith.constant 0 : index
    %60 = vector.load %arg2[%c6, %c0_34, %c0_35] : memref<9x8x1xf32, #tpu.memory_space<vmem>>, vector<1x8x1xf32>
    %61 = vector.shape_cast %60 : vector<1x8x1xf32> to vector<8x1xf32>
    %62 = vector.broadcast %61 : vector<8x1xf32> to vector<8x256xf32>
    %63 = arith.mulf %59, %62 : vector<8x256xf32>
    %64 = arith.addf %56, %63 : vector<8x256xf32>
    %c0_36 = arith.constant 0 : index
    %c144 = arith.constant 144 : index
    %65 = vector.load %arg8[%c0_36, %c144] : memref<8x512xf32, #tpu.memory_space<vmem>>, vector<8x256xf32>
    %c7 = arith.constant 7 : index
    %c0_37 = arith.constant 0 : index
    %c0_38 = arith.constant 0 : index
    %66 = vector.load %arg2[%c7, %c0_37, %c0_38] : memref<9x8x1xf32, #tpu.memory_space<vmem>>, vector<1x8x1xf32>
    %67 = vector.shape_cast %66 : vector<1x8x1xf32> to vector<8x1xf32>
    %68 = vector.broadcast %67 : vector<8x1xf32> to vector<8x256xf32>
    %69 = arith.mulf %65, %68 : vector<8x256xf32>
    %70 = arith.addf %64, %69 : vector<8x256xf32>
    %c0_39 = arith.constant 0 : index
    %c145 = arith.constant 145 : index
    %71 = vector.load %arg8[%c0_39, %c145] : memref<8x512xf32, #tpu.memory_space<vmem>>, vector<8x256xf32>
    %72 = vector.broadcast %10 : vector<1x256xf32> to vector<8x256xf32>
    %73 = arith.mulf %71, %72 : vector<8x256xf32>
    %c8 = arith.constant 8 : index
    %c0_40 = arith.constant 0 : index
    %c0_41 = arith.constant 0 : index
    %74 = vector.load %arg2[%c8, %c0_40, %c0_41] : memref<9x8x1xf32, #tpu.memory_space<vmem>>, vector<1x8x1xf32>
    %75 = vector.shape_cast %74 : vector<1x8x1xf32> to vector<8x1xf32>
    %76 = vector.broadcast %75 : vector<8x1xf32> to vector<8x256xf32>
    %77 = arith.mulf %73, %76 : vector<8x256xf32>
    %78 = arith.addf %70, %77 : vector<8x256xf32>
    %c0_42 = arith.constant 0 : index
    %c0_43 = arith.constant 0 : index
    %79 = vector.load %arg9[%c0_42, %c0_43] : memref<8x256xf32, #tpu.memory_space<vmem>>, vector<8x256xf32>
    tpu.vector_store %arg9[%c0_42, %c0_43], %78 {strides = array<i32>} : memref<8x256xf32, #tpu.memory_space<vmem>>, vector<8x256xf32>,
    %c0_44 = arith.constant 0 : index
    %c0_45 = arith.constant 0 : index
    %80 = vector.load %arg5[%c0_44, %c0_45] : memref<4x1xf32, #tpu.memory_space<vmem>>, vector<4x1xf32>
    %81 = vector.shape_cast %80 : vector<4x1xf32> to vector<4x1xf32>
    %82 = vector.broadcast %81 : vector<4x1xf32> to vector<4x256xf32>
    %c0_46 = arith.constant 0 : index
    %c0_47 = arith.constant 0 : index
    %83 = vector.load %arg9[%c0_46, %c0_47] : memref<8x256xf32, #tpu.memory_space<vmem>>, vector<1x256xf32>
    %c0_48 = arith.constant 0 : index
    %c0_49 = arith.constant 0 : index
    %c0_50 = arith.constant 0 : index
    %84 = vector.load %arg4[%c0_48, %c0_49, %c0_50] : memref<4x4x1xf32, #tpu.memory_space<vmem>>, vector<1x4x1xf32>
    %85 = vector.shape_cast %84 : vector<1x4x1xf32> to vector<4x1xf32>
    %86 = vector.broadcast %83 : vector<1x256xf32> to vector<4x256xf32>
    %87 = vector.broadcast %85 : vector<4x1xf32> to vector<4x256xf32>
    %88 = arith.mulf %86, %87 : vector<4x256xf32>
    %89 = arith.addf %82, %88 : vector<4x256xf32>
    %c1_51 = arith.constant 1 : index
    %c0_52 = arith.constant 0 : index
    %90 = vector.load %arg9[%c1_51, %c0_52] : memref<8x256xf32, #tpu.memory_space<vmem>>, vector<1x256xf32>
    %c1_53 = arith.constant 1 : index
    %c0_54 = arith.constant 0 : index
    %c0_55 = arith.constant 0 : index
    %91 = vector.load %arg4[%c1_53, %c0_54, %c0_55] : memref<4x4x1xf32, #tpu.memory_space<vmem>>, vector<1x4x1xf32>
    %92 = vector.shape_cast %91 : vector<1x4x1xf32> to vector<4x1xf32>
    %93 = vector.broadcast %90 : vector<1x256xf32> to vector<4x256xf32>
    %94 = vector.broadcast %92 : vector<4x1xf32> to vector<4x256xf32>
    %95 = arith.mulf %93, %94 : vector<4x256xf32>
    %96 = arith.addf %89, %95 : vector<4x256xf32>
    %c2_56 = arith.constant 2 : index
    %c0_57 = arith.constant 0 : index
    %97 = vector.load %arg9[%c2_56, %c0_57] : memref<8x256xf32, #tpu.memory_space<vmem>>, vector<1x256xf32>
    %c2_58 = arith.constant 2 : index
    %c0_59 = arith.constant 0 : index
    %c0_60 = arith.constant 0 : index
    %98 = vector.load %arg4[%c2_58, %c0_59, %c0_60] : memref<4x4x1xf32, #tpu.memory_space<vmem>>, vector<1x4x1xf32>
    %99 = vector.shape_cast %98 : vector<1x4x1xf32> to vector<4x1xf32>
    %100 = vector.broadcast %97 : vector<1x256xf32> to vector<4x256xf32>
    %101 = vector.broadcast %99 : vector<4x1xf32> to vector<4x256xf32>
    %102 = arith.mulf %100, %101 : vector<4x256xf32>
    %103 = arith.addf %96, %102 : vector<4x256xf32>
    %c3_61 = arith.constant 3 : index
    %c0_62 = arith.constant 0 : index
    %104 = vector.load %arg9[%c3_61, %c0_62] : memref<8x256xf32, #tpu.memory_space<vmem>>, vector<1x256xf32>
    %c3_63 = arith.constant 3 : index
    %c0_64 = arith.constant 0 : index
    %c0_65 = arith.constant 0 : index
    %105 = vector.load %arg4[%c3_63, %c0_64, %c0_65] : memref<4x4x1xf32, #tpu.memory_space<vmem>>, vector<1x4x1xf32>
    %106 = vector.shape_cast %105 : vector<1x4x1xf32> to vector<4x1xf32>
    %107 = vector.broadcast %104 : vector<1x256xf32> to vector<4x256xf32>
    %108 = vector.broadcast %106 : vector<4x1xf32> to vector<4x256xf32>
    %109 = arith.mulf %107, %108 : vector<4x256xf32>
    %110 = arith.addf %103, %109 : vector<4x256xf32>
    %c0_66 = arith.constant 0 : index
    %c0_67 = arith.constant 0 : index
    %c0_68 = arith.constant 0 : index
    %111 = vector.load %arg1[%c0_66, %c0_67, %c0_68] : memref<1x8x256xf32, #tpu.memory_space<vmem>>, vector<1x4x256xf32>
    %112 = vector.shape_cast %111 : vector<1x4x256xf32> to vector<4x256xf32>
    %113 = arith.addf %110, %112 : vector<4x256xf32>
    %cst_69 = arith.constant 0.000000e+00 : f32
    %114 = vector.broadcast %cst_69 : f32 to vector<4x256xf32>
    %115 = arith.maximumf %113, %114 : vector<4x256xf32>
    %c0_70 = arith.constant 0 : index
    %c0_71 = arith.constant 0 : index
    %c0_72 = arith.constant 0 : index
    %116 = vector.load %arg7[%c0_70, %c0_71, %c0_72] : memref<1x8x256xf32, #tpu.memory_space<vmem>>, vector<1x4x256xf32>
    %117 = vector.shape_cast %116 : vector<1x4x256xf32> to vector<4x256xf32>
    %118 = vector.shape_cast %115 : vector<4x256xf32> to vector<1x4x256xf32>
    tpu.vector_store %arg7[%c0_70, %c0_71, %c0_72], %118 {strides = array<i32>} : memref<1x8x256xf32, #tpu.memory_space<vmem>>, vector<1x4x256xf32>,
    %119 = vector.shape_cast %80 : vector<4x1xf32> to vector<4x1xf32>
    %120 = vector.broadcast %119 : vector<4x1xf32> to vector<4x256xf32>
    %c4_73 = arith.constant 4 : index
    %c0_74 = arith.constant 0 : index
    %121 = vector.load %arg9[%c4_73, %c0_74] : memref<8x256xf32, #tpu.memory_space<vmem>>, vector<1x256xf32>
    %c0_75 = arith.constant 0 : index
    %c0_76 = arith.constant 0 : index
    %c0_77 = arith.constant 0 : index
    %122 = vector.load %arg4[%c0_75, %c0_76, %c0_77] : memref<4x4x1xf32, #tpu.memory_space<vmem>>, vector<1x4x1xf32>
    %123 = vector.shape_cast %122 : vector<1x4x1xf32> to vector<4x1xf32>
    %124 = vector.broadcast %121 : vector<1x256xf32> to vector<4x256xf32>
    %125 = vector.broadcast %123 : vector<4x1xf32> to vector<4x256xf32>
    %126 = arith.mulf %124, %125 : vector<4x256xf32>
    %127 = arith.addf %120, %126 : vector<4x256xf32>
    %c5_78 = arith.constant 5 : index
    %c0_79 = arith.constant 0 : index
    %128 = vector.load %arg9[%c5_78, %c0_79] : memref<8x256xf32, #tpu.memory_space<vmem>>, vector<1x256xf32>
    %c1_80 = arith.constant 1 : index
    %c0_81 = arith.constant 0 : index
    %c0_82 = arith.constant 0 : index
    %129 = vector.load %arg4[%c1_80, %c0_81, %c0_82] : memref<4x4x1xf32, #tpu.memory_space<vmem>>, vector<1x4x1xf32>
    %130 = vector.shape_cast %129 : vector<1x4x1xf32> to vector<4x1xf32>
    %131 = vector.broadcast %128 : vector<1x256xf32> to vector<4x256xf32>
    %132 = vector.broadcast %130 : vector<4x1xf32> to vector<4x256xf32>
    %133 = arith.mulf %131, %132 : vector<4x256xf32>
    %134 = arith.addf %127, %133 : vector<4x256xf32>
    %c6_83 = arith.constant 6 : index
    %c0_84 = arith.constant 0 : index
    %135 = vector.load %arg9[%c6_83, %c0_84] : memref<8x256xf32, #tpu.memory_space<vmem>>, vector<1x256xf32>
    %c2_85 = arith.constant 2 : index
    %c0_86 = arith.constant 0 : index
    %c0_87 = arith.constant 0 : index
    %136 = vector.load %arg4[%c2_85, %c0_86, %c0_87] : memref<4x4x1xf32, #tpu.memory_space<vmem>>, vector<1x4x1xf32>
    %137 = vector.shape_cast %136 : vector<1x4x1xf32> to vector<4x1xf32>
    %138 = vector.broadcast %135 : vector<1x256xf32> to vector<4x256xf32>
    %139 = vector.broadcast %137 : vector<4x1xf32> to vector<4x256xf32>
    %140 = arith.mulf %138, %139 : vector<4x256xf32>
    %141 = arith.addf %134, %140 : vector<4x256xf32>
    %c7_88 = arith.constant 7 : index
    %c0_89 = arith.constant 0 : index
    %142 = vector.load %arg9[%c7_88, %c0_89] : memref<8x256xf32, #tpu.memory_space<vmem>>, vector<1x256xf32>
    %c3_90 = arith.constant 3 : index
    %c0_91 = arith.constant 0 : index
    %c0_92 = arith.constant 0 : index
    %143 = vector.load %arg4[%c3_90, %c0_91, %c0_92] : memref<4x4x1xf32, #tpu.memory_space<vmem>>, vector<1x4x1xf32>
    %144 = vector.shape_cast %143 : vector<1x4x1xf32> to vector<4x1xf32>
    %145 = vector.broadcast %142 : vector<1x256xf32> to vector<4x256xf32>
    %146 = vector.broadcast %144 : vector<4x1xf32> to vector<4x256xf32>
    %147 = arith.mulf %145, %146 : vector<4x256xf32>
    %148 = arith.addf %141, %147 : vector<4x256xf32>
    %c0_93 = arith.constant 0 : index
    %c4_94 = arith.constant 4 : index
    %c0_95 = arith.constant 0 : index
    %149 = vector.load %arg1[%c0_93, %c4_94, %c0_95] : memref<1x8x256xf32, #tpu.memory_space<vmem>>, vector<1x4x256xf32>
    %150 = vector.shape_cast %149 : vector<1x4x256xf32> to vector<4x256xf32>
    %151 = arith.addf %148, %150 : vector<4x256xf32>
    %cst_96 = arith.constant 0.000000e+00 : f32
    %152 = vector.broadcast %cst_96 : f32 to vector<4x256xf32>
    %153 = arith.maximumf %151, %152 : vector<4x256xf32>
    %c0_97 = arith.constant 0 : index
    %c4_98 = arith.constant 4 : index
    %c0_99 = arith.constant 0 : index
    %154 = vector.load %arg7[%c0_97, %c4_98, %c0_99] : memref<1x8x256xf32, #tpu.memory_space<vmem>>, vector<1x4x256xf32>
    %155 = vector.shape_cast %154 : vector<1x4x256xf32> to vector<4x256xf32>
    %156 = vector.shape_cast %153 : vector<4x256xf32> to vector<1x4x256xf32>
    tpu.vector_store %arg7[%c0_97, %c4_98, %c0_99], %156 {strides = array<i32>} : memref<1x8x256xf32, #tpu.memory_space<vmem>>, vector<1x4x256xf32>,
    return
  }
  func.func @transform_0(%arg0: i32) -> (i32, i32, i32) {
    %c0_i32 = arith.constant 0 : i32
    %c0_i32_0 = arith.constant 0 : i32
    %c0_i32_1 = arith.constant 0 : i32
    return %arg0, %c0_i32, %c0_i32_0 : i32, i32, i32
  }
  func.func @transform_1(%arg0: i32) -> (i32, i32, i32) {
    %c0_i32 = arith.constant 0 : i32
    %c0_i32_0 = arith.constant 0 : i32
    %c0_i32_1 = arith.constant 0 : i32
    %c0_i32_2 = arith.constant 0 : i32
    return %c0_i32, %c0_i32_0, %c0_i32_1 : i32, i32, i32
  }
  func.func @transform_2(%arg0: i32) -> (i32, i32) {
    %c0_i32 = arith.constant 0 : i32
    %c0_i32_0 = arith.constant 0 : i32
    %c0_i32_1 = arith.constant 0 : i32
    return %c0_i32, %c0_i32_0 : i32, i32
  }
  func.func @transform_3(%arg0: i32) -> (i32, i32, i32) {
    %c0_i32 = arith.constant 0 : i32
    %c0_i32_0 = arith.constant 0 : i32
    %c0_i32_1 = arith.constant 0 : i32
    %c0_i32_2 = arith.constant 0 : i32
    return %c0_i32, %c0_i32_0, %c0_i32_1 : i32, i32, i32
  }
  func.func @transform_4(%arg0: i32) -> (i32, i32) {
    %c0_i32 = arith.constant 0 : i32
    %c0_i32_0 = arith.constant 0 : i32
    %c0_i32_1 = arith.constant 0 : i32
    return %c0_i32, %c0_i32_0 : i32, i32
  }
  func.func @transform_5(%arg0: i32) -> (i32, i32, i32) {
    %c0_i32 = arith.constant 0 : i32
    %c0_i32_0 = arith.constant 0 : i32
    %c0_i32_1 = arith.constant 0 : i32
    %c0_i32_2 = arith.constant 0 : i32
    return %c0_i32, %c0_i32_0, %c0_i32_1 : i32, i32, i32
  }
  func.func @transform_6(%arg0: i32) -> (i32, i32, i32) {
    %c0_i32 = arith.constant 0 : i32
    %c0_i32_0 = arith.constant 0 : i32
    %c0_i32_1 = arith.constant 0 : i32
    return %arg0, %c0_i32, %c0_i32_0 : i32, i32, i32
  }
}

</mosaic_0001>

<llo_original>
// kernel: tile.16
$region0: #{tile.16}
  #allocation0 [shape = 's32[1]{0}', space=sflag, size = 0x4, scoped, tag = 'scoped memory for tile.16']
  %s0 = inlined_call_operand.vmem [shape: f32[4], index: 0, kind: input, shape index: {}]
  %s1 = inlined_call_operand.vmem [shape: f32[2,4], index: 1, kind: output, shape index: {}]
  // Predicated region
  $region2: #{tile.16} parent=0 // pred_check
    _
  $region3: #{tile.16} parent=0 // pred_check_branch
    %3 = sbr.rel (0) target = $region5
  $region4: #{tile.16} parent=0 // pred_region
    _
  $region5: #{tile.16} parent=0 // pred_fallthru
    _
  %v4 = vld [vmem:[%s0] ss:$0 sm:$0xff]
  %5 = vst [vmem:[%s1] sm:$0x3] %v4

// kernel: tile.0
$region0: #{tile.0}
  %s0 = inlined_call_operand.vmem [shape: f32[2,4], index: 0, kind: input, shape index: {}]
  %s1 = inlined_call_operand.vmem [shape: f32[8,1], index: 1, kind: output, shape index: {}]
  $region1: #{tile.0} parent=0
    #allocation0 [shape = 'u8[4096]{0}', space=vmem, size = 0x1000, scoped, tag = 'scoped mem for input reshape']
    %s3 = sshllo.u32 0, 2
    %v4 = vld [vmem:[%s0] sm:%s3]
    %5 = vst [vmem:[#allocation0] sm:%s3] %v4
    %v6 = vld [vmem:[#allocation0] sm:$0x3]
    %vm7 = vcmask 7168
    %8 = vst.msk [vmem:[%s1] ss:$4 sm:$0x3] %vm7, %v6
    %v9 = vld [vmem:[#allocation0] sm:$0x3]
    %10 = vrot.lane.b32.xlu0 %v9, 127
    %v11 = vpop.permute.xlu0 %10
    %vm12 = vcmask 7168
    %s13 = scalar_lea.vmem %s1, 1
    %14 = vst.msk [vmem:[%s13] ss:$4 sm:$0x3] %vm12, %v11
    %v15 = vld [vmem:[#allocation0] sm:$0x3]
    %16 = vrot.lane.b32.xlu0 %v15, 126
    %v17 = vpop.permute.xlu0 %16
    %vm18 = vcmask 7168
    %s19 = scalar_lea.vmem %s1, 2
    %20 = vst.msk [vmem:[%s19] ss:$4 sm:$0x3] %vm18, %v17
    %v21 = vld [vmem:[#allocation0] sm:$0x3]
    %22 = vrot.lane.b32.xlu0 %v21, 125
    %v23 = vpop.permute.xlu0 %22
    %vm24 = vcmask 7168
    %s25 = scalar_lea.vmem %s1, 3
    %26 = vst.msk [vmem:[%s25] ss:$4 sm:$0x3] %vm24, %v23

// kernel: residual_dwsep_block.1
$region0: #{residual_dwsep_block.1}
  #allocation0 [shape = 'u32[]', space=smem, size = 0x4, offset = 0x4, fixed_abs, tag = 'smem constant byte address 0x4 - core index']
  #allocation1 [shape = 'u32[144,128]{1,0:T(1,128)}', space=vmem, size = 0x12000, scoped, tag = 'internal scratch']
  #allocation2 [shape = 'f32[8,512]{1,0:T(8,128)}', space=vmem, size = 0x4000, scoped, tag = 'scratch operand']
  #allocation3 [shape = 'f32[8,256]{1,0:T(8,128)}', space=vmem, size = 0x2000, scoped, tag = 'scratch operand']
  %s0 = inlined_call_operand.vmem [shape: f32[1,8,256], index: 0, kind: input, shape index: {}]
  %s1 = inlined_call_operand.vmem [shape: f32[9,8,1], index: 1, kind: input, shape index: {}]
  %s2 = inlined_call_operand.vmem [shape: f32[8,1], index: 2, kind: input, shape index: {}]
  %s3 = inlined_call_operand.vmem [shape: f32[4,4,1], index: 3, kind: input, shape index: {}]
  %s4 = inlined_call_operand.vmem [shape: f32[4,1], index: 4, kind: input, shape index: {}]
  %s5 = inlined_call_operand.vmem [shape: f32[2,1,256], index: 5, kind: input, shape index: {}]
  %s6 = inlined_call_operand.vmem [shape: f32[1,8,256], index: 6, kind: output, shape index: {}]
  %s7 = sld [smem:[#allocation0]]
  $region34: #{residual_dwsep_block.1} parent=0
    _
  %s9 = ssub.s32 1, %s7
  %s10 = scalar_select 0, %s9, %s7
  // Predicated region
  $region2: #{residual_dwsep_block.1} parent=0 // pred_check
    _
  $region3: #{residual_dwsep_block.1} parent=0 // pred_check_branch
    %12 = sbr.rel (0) target = $region5
  $region4: #{residual_dwsep_block.1} parent=0 // pred_region
    _
  $region5: #{residual_dwsep_block.1} parent=0 // pred_fallthru
    _
  // Predicated region
  $region6: #{residual_dwsep_block.1} parent=0 // pred_check
    _
  $region7: #{residual_dwsep_block.1} parent=0 // pred_check_branch
    %14 = sbr.rel (0) target = $region9
  $region8: #{residual_dwsep_block.1} parent=0 // pred_region
    _
  $region9: #{residual_dwsep_block.1} parent=0 // pred_fallthru
    _
  // Predicated region
  $region10: #{residual_dwsep_block.1} parent=0 // pred_check
    _
  $region11: #{residual_dwsep_block.1} parent=0 // pred_check_branch
    %16 = sbr.rel (0) target = $region13
  $region12: #{residual_dwsep_block.1} parent=0 // pred_region
    _
  $region13: #{residual_dwsep_block.1} parent=0 // pred_fallthru
    _
  // Predicated region
  $region14: #{residual_dwsep_block.1} parent=0 // pred_check
    _
  $region15: #{residual_dwsep_block.1} parent=0 // pred_check_branch
    %18 = sbr.rel (0) target = $region17
  $region16: #{residual_dwsep_block.1} parent=0 // pred_region
    _
  $region17: #{residual_dwsep_block.1} parent=0 // pred_fallthru
    _
  // Predicated region
  $region18: #{residual_dwsep_block.1} parent=0 // pred_check
    _
  $region19: #{residual_dwsep_block.1} parent=0 // pred_check_branch
    %20 = sbr.rel (0) target = $region21
  $region20: #{residual_dwsep_block.1} parent=0 // pred_region
    _
  $region21: #{residual_dwsep_block.1} parent=0 // pred_fallthru
    _
  // Predicated region
  $region22: #{residual_dwsep_block.1} parent=0 // pred_check
    _
  $region23: #{residual_dwsep_block.1} parent=0 // pred_check_branch
    %22 = sbr.rel (0) target = $region25
  $region24: #{residual_dwsep_block.1} parent=0 // pred_region
    _
  $region25: #{residual_dwsep_block.1} parent=0 // pred_fallthru
    _
  %v23 = vld [vmem:[%s0] sm:$0xff]
  %v24 = vld [vmem:[%s0 + $0x8] sm:$0xff]
  %25 = vst [vmem:[#allocation2] sm:$0xff] 0.0
  %26 = vst [vmem:[#allocation2 + $0x18] sm:$0xff] 0.0
  %27 = vst [vmem:[#allocation2 + $0x8] sm:$0xff] %v23
  %28 = vst [vmem:[#allocation2 + $0x10] sm:$0xff] %v24
  %v29 = vld [vmem:[%s5] sm:$0x3]
  %s30 = scalar_lea.vmem %s5, 2
  %v31 = vld [vmem:[%s30] sm:$0x3]
  %v32 = vld [vmem:[%s2] sm:$0xff]
  %34 = vset.pattern.permute.xlu0 0
  %35 = vperm.xlu0 %34, %v32
  %v36 = vpop.permute.xlu0 %35
  %v38 = vld [vmem:[#allocation2] sm:$0xff]
  %v39 = vld [vmem:[#allocation2 + $0x8] sm:$0xff]
  %v40 = vld [vmem:[#allocation2 + $0x10] sm:$0xff]
  %v42 = vlaneseq
  %v43 = vshrl.u32 %v42, 7
  %v44 = vsub.s32 0, %v43
  %v45 = vrot.slane %v29, %v44
  %v46 = vlaneseq
  %v47 = vshrl.u32 %v46, 7
  %v48 = vsub.s32 1, %v47
  %v49 = vrot.slane %v29, %v48
  %50 = vrot.lane.b32.xlu0 %v45, 111
  %v51 = vpop.permute.xlu0 %50
  %52 = vrot.lane.b32.xlu0 %v49, 111
  %v53 = vpop.permute.xlu0 %52
  %vm54 = vcmask 908288
  %v55 = vsel %vm54, %v51, %v53
  %v59 = vmul.f32 %v38, %v51
  %v60 = vmul.f32 %v39, %v55
  %v61 = vmul.f32 %v40, %v53
  %v62 = vld [vmem:[%s1] sm:$0xff]
  %64 = vset.pattern.permute.xlu0 0
  %65 = vperm.xlu0 %64, %v62
  %v66 = vpop.permute.xlu0 %65
  %v68 = vmul.f32 %v59, %v66
  %v69 = vmul.f32 %v60, %v66
  %v70 = vmul.f32 %v61, %v66
  %v71 = vadd.f32 %v36, %v68
  %v72 = vadd.f32 %v36, %v69
  %v73 = vadd.f32 %v36, %v70
  %s74 = scalar_lea.vmem %s1, 8
  %v75 = vld [vmem:[%s74] sm:$0xff]
  %77 = vset.pattern.permute.xlu0 0
  %78 = vperm.xlu0 %77, %v75
  %v79 = vpop.permute.xlu0 %78
  %v81 = vmul.f32 %v38, %v79
  %v82 = vmul.f32 %v39, %v79
  %v83 = vmul.f32 %v40, %v79
  %87 = vrot.lane.b32.xlu0 %v81, 127
  %v88 = vpop.permute.xlu0 %87
  %89 = vrot.lane.b32.xlu0 %v82, 127
  %v90 = vpop.permute.xlu0 %89
  %91 = vrot.lane.b32.xlu0 %v83, 127
  %v92 = vpop.permute.xlu0 %91
  %vm93 = vcmask 1039360
  %v94 = vsel %vm93, %v88, %v90
  %v95 = vsel %vm93, %v90, %v92
  %v99 = vadd.f32 %v71, %v94
  %v100 = vadd.f32 %v72, %v95
  %v101 = vadd.f32 %v73, %v92
  %v103 = vlaneseq
  %v104 = vshrl.u32 %v103, 7
  %v105 = vsub.s32 0, %v104
  %v106 = vrot.slane %v31, %v105
  %v107 = vlaneseq
  %v108 = vshrl.u32 %v107, 7
  %v109 = vsub.s32 1, %v108
  %v110 = vrot.slane %v31, %v109
  %111 = vrot.lane.b32.xlu0 %v106, 113
  %v112 = vpop.permute.xlu0 %111
  %113 = vrot.lane.b32.xlu0 %v110, 113
  %v114 = vpop.permute.xlu0 %113
  %vm115 = vcmask 924672
  %v116 = vsel %vm115, %v112, %v114
  %v120 = vmul.f32 %v38, %v112
  %v121 = vmul.f32 %v39, %v116
  %v122 = vmul.f32 %v40, %v114
  %s123 = scalar_lea.vmem %s1, 16
  %v124 = vld [vmem:[%s123] sm:$0xff]
  %126 = vset.pattern.permute.xlu0 0
  %127 = vperm.xlu0 %126, %v124
  %v128 = vpop.permute.xlu0 %127
  %v130 = vmul.f32 %v120, %v128
  %v131 = vmul.f32 %v121, %v128
  %v132 = vmul.f32 %v122, %v128
  %136 = vrot.lane.b32.xlu0 %v130, 126
  %v137 = vpop.permute.xlu0 %136
  %138 = vrot.lane.b32.xlu0 %v131, 126
  %v139 = vpop.permute.xlu0 %138
  %140 = vrot.lane.b32.xlu0 %v132, 126
  %v141 = vpop.permute.xlu0 %140
  %vm142 = vcmask 1031168
  %v143 = vsel %vm142, %v137, %v139
  %v144 = vsel %vm142, %v139, %v141
  %v148 = vadd.f32 %v99, %v143
  %v149 = vadd.f32 %v100, %v144
  %v150 = vadd.f32 %v101, %v141
  %151 = vrot.lane.b32.xlu0 %v45, 127
  %v152 = vpop.permute.xlu0 %151
  %153 = vrot.lane.b32.xlu0 %v49, 127
  %v154 = vpop.permute.xlu0 %153
  %v155 = vsel %vm93, %v152, %v154
  %v159 = vmul.f32 %v38, %v152
  %v160 = vmul.f32 %v39, %v155
  %v161 = vmul.f32 %v40, %v154
  %s162 = scalar_lea.vmem %s1, 24
  %v163 = vld [vmem:[%s162] sm:$0xff]
  %165 = vset.pattern.permute.xlu0 0
  %166 = vperm.xlu0 %165, %v163
  %v167 = vpop.permute.xlu0 %166
  %v169 = vmul.f32 %v159, %v167
  %v170 = vmul.f32 %v160, %v167
  %v171 = vmul.f32 %v161, %v167
  %175 = vrot.lane.b32.xlu0 %v169, 112
  %v176 = vpop.permute.xlu0 %175
  %177 = vrot.lane.b32.xlu0 %v170, 112
  %v178 = vpop.permute.xlu0 %177
  %179 = vrot.lane.b32.xlu0 %v171, 112
  %v180 = vpop.permute.xlu0 %179
  %vm181 = vcmask 916480
  %v182 = vsel %vm181, %v176, %v178
  %v183 = vsel %vm181, %v178, %v180
  %v187 = vadd.f32 %v148, %v182
  %v188 = vadd.f32 %v149, %v183
  %v189 = vadd.f32 %v150, %v180
  %s190 = scalar_lea.vmem %s1, 32
  %v191 = vld [vmem:[%s190] sm:$0xff]
  %193 = vset.pattern.permute.xlu0 0
  %194 = vperm.xlu0 %193, %v191
  %v195 = vpop.permute.xlu0 %194
  %v197 = vmul.f32 %v23, %v195
  %v198 = vmul.f32 %v24, %v195
  %201 = vrot.lane.b32.xlu0 %v197, 111
  %v202 = vpop.permute.xlu0 %201
  %203 = vrot.lane.b32.xlu0 %v198, 111
  %v204 = vpop.permute.xlu0 %203
  %v205 = vsel %vm54, %v202, %v204
  %v209 = vadd.f32 %v187, %v202
  %v210 = vadd.f32 %v188, %v205
  %v211 = vadd.f32 %v189, %v204
  %v212 = vld [vmem:[#allocation2 + $0x8] sm:$0xff]
  %v213 = vld [vmem:[#allocation2 + $0x10] sm:$0xff]
  %v214 = vld [vmem:[#allocation2 + $0x18] sm:$0xff]
  %215 = vrot.lane.b32.xlu0 %v106, 1
  %v216 = vpop.permute.xlu0 %215
  %217 = vrot.lane.b32.xlu0 %v110, 1
  %v218 = vpop.permute.xlu0 %217
  %vm219 = vcmask 7168
  %v220 = vsel %vm219, %v216, %v218
  %v224 = vmul.f32 %v212, %v216
  %v225 = vmul.f32 %v213, %v220
  %v226 = vmul.f32 %v214, %v218
  %s227 = scalar_lea.vmem %s1, 40
  %v228 = vld [vmem:[%s227] sm:$0xff]
  %230 = vset.pattern.permute.xlu0 0
  %231 = vperm.xlu0 %230, %v228
  %v232 = vpop.permute.xlu0 %231
  %v234 = vmul.f32 %v224, %v232
  %v235 = vmul.f32 %v225, %v232
  %v236 = vmul.f32 %v226, %v232
  %240 = vrot.lane.b32.xlu0 %v234, 110
  %v241 = vpop.permute.xlu0 %240
  %242 = vrot.lane.b32.xlu0 %v235, 110
  %v243 = vpop.permute.xlu0 %242
  %244 = vrot.lane.b32.xlu0 %v236, 110
  %v245 = vpop.permute.xlu0 %244
  %vm246 = vcmask 900096
  %v247 = vsel %vm246, %v241, %v243
  %v248 = vsel %vm246, %v243, %v245
  %v252 = vadd.f32 %v209, %v241
  %v253 = vadd.f32 %v210, %v247
  %v254 = vadd.f32 %v211, %v248
  %255 = vrot.lane.b32.xlu0 %v45, 15
  %v256 = vpop.permute.xlu0 %255
  %257 = vrot.lane.b32.xlu0 %v49, 15
  %v258 = vpop.permute.xlu0 %257
  %vm259 = vcmask 121856
  %v260 = vsel %vm259, %v256, %v258
  %v264 = vmul.f32 %v212, %v256
  %v265 = vmul.f32 %v213, %v260
  %v266 = vmul.f32 %v214, %v258
  %s267 = scalar_lea.vmem %s1, 48
  %v268 = vld [vmem:[%s267] sm:$0xff]
  %270 = vset.pattern.permute.xlu0 0
  %271 = vperm.xlu0 %270, %v268
  %v272 = vpop.permute.xlu0 %271
  %v274 = vmul.f32 %v264, %v272
  %v275 = vmul.f32 %v265, %v272
  %v276 = vmul.f32 %v266, %v272
  %280 = vrot.lane.b32.xlu0 %v274, 96
  %v281 = vpop.permute.xlu0 %280
  %282 = vrot.lane.b32.xlu0 %v275, 96
  %v283 = vpop.permute.xlu0 %282
  %284 = vrot.lane.b32.xlu0 %v276, 96
  %v285 = vpop.permute.xlu0 %284
  %vm286 = vcmask 785408
  %v287 = vsel %vm286, %v281, %v283
  %v288 = vsel %vm286, %v283, %v285
  %v292 = vadd.f32 %v252, %v281
  %v293 = vadd.f32 %v253, %v287
  %v294 = vadd.f32 %v254, %v288
  %s295 = scalar_lea.vmem %s1, 56
  %v296 = vld [vmem:[%s295] sm:$0xff]
  %298 = vset.pattern.permute.xlu0 0
  %299 = vperm.xlu0 %298, %v296
  %v300 = vpop.permute.xlu0 %299
  %v302 = vmul.f32 %v212, %v300
  %v303 = vmul.f32 %v213, %v300
  %v304 = vmul.f32 %v214, %v300
  %308 = vrot.lane.b32.xlu0 %v302, 95
  %v309 = vpop.permute.xlu0 %308
  %310 = vrot.lane.b32.xlu0 %v303, 95
  %v311 = vpop.permute.xlu0 %310
  %312 = vrot.lane.b32.xlu0 %v304, 95
  %v313 = vpop.permute.xlu0 %312
  %vm314 = vcmask 777216
  %v315 = vsel %vm314, %v309, %v311
  %v316 = vsel %vm314, %v311, %v313
  %v320 = vadd.f32 %v292, %v309
  %v321 = vadd.f32 %v293, %v315
  %v322 = vadd.f32 %v294, %v316
  %323 = vrot.lane.b32.xlu0 %v106, 17
  %v324 = vpop.permute.xlu0 %323
  %325 = vrot.lane.b32.xlu0 %v110, 17
  %v326 = vpop.permute.xlu0 %325
  %vm327 = vcmask 138240
  %v328 = vsel %vm327, %v324, %v326
  %v332 = vmul.f32 %v212, %v324
  %v333 = vmul.f32 %v213, %v328
  %v334 = vmul.f32 %v214, %v326
  %s335 = scalar_lea.vmem %s1, 64
  %v336 = vld [vmem:[%s335] sm:$0xff]
  %338 = vset.pattern.permute.xlu0 0
  %339 = vperm.xlu0 %338, %v336
  %v340 = vpop.permute.xlu0 %339
  %v342 = vmul.f32 %v332, %v340
  %v343 = vmul.f32 %v333, %v340
  %v344 = vmul.f32 %v334, %v340
  %348 = vrot.lane.b32.xlu0 %v342, 94
  %v349 = vpop.permute.xlu0 %348
  %350 = vrot.lane.b32.xlu0 %v343, 94
  %v351 = vpop.permute.xlu0 %350
  %352 = vrot.lane.b32.xlu0 %v344, 94
  %v353 = vpop.permute.xlu0 %352
  %vm354 = vcmask 769024
  %v355 = vsel %vm354, %v349, %v351
  %v356 = vsel %vm354, %v351, %v353
  %v360 = vadd.f32 %v320, %v349
  %v361 = vadd.f32 %v321, %v355
  %v362 = vadd.f32 %v322, %v356
  %366 = vrot.lane.b32.xlu0 %v360, 17
  %v367 = vpop.permute.xlu0 %366
  %368 = vrot.lane.b32.xlu0 %v361, 17
  %v369 = vpop.permute.xlu0 %368
  %370 = vrot.lane.b32.xlu0 %v362, 17
  %v371 = vpop.permute.xlu0 %370
  %v372 = vsel %vm327, %v367, %v369
  %v373 = vsel %vm327, %v369, %v371
  %376 = vst [vmem:[#allocation3] sm:$0xff] %v372
  %377 = vst [vmem:[#allocation3 + $0x8] sm:$0xff] %v373
  %v378 = vld [vmem:[%s4] sm:$0xf]
  %380 = vset.pattern.permute.xlu0 0
  %381 = vperm.xlu0 %380, %v378
  %v382 = vpop.permute.xlu0 %381
  %v384 = vld [vmem:[#allocation3] ss:$8 sm:$0x3]
  %v385 = vld [vmem:[%s3] sm:$0xf]
  %v387 = vlaneseq
  %v388 = vshrl.u32 %v387, 7
  %v389 = vsub.s32 0, %v388
  %v390 = vrot.slane %v384, %v389
  %v391 = vlaneseq
  %v392 = vshrl.u32 %v391, 7
  %v393 = vsub.s32 1, %v392
  %v394 = vrot.slane %v384, %v393
  %398 = vset.pattern.permute.xlu0 0
  %399 = vperm.xlu0 %398, %v385
  %v400 = vpop.permute.xlu0 %399
  %v402 = vmul.f32 %v390, %v400
  %v403 = vmul.f32 %v394, %v400
  %v404 = vadd.f32 %v382, %v402
  %v405 = vadd.f32 %v382, %v403
  %s406 = scalar_lea.vmem [#allocation3], 1
  %v407 = vld [vmem:[%s406] ss:$8 sm:$0x3]
  %s408 = scalar_lea.vmem %s3, 4
  %v409 = vld [vmem:[%s408] sm:$0xf]
  %v411 = vlaneseq
  %v412 = vshrl.u32 %v411, 7
  %v413 = vsub.s32 0, %v412
  %v414 = vrot.slane %v407, %v413
  %v415 = vlaneseq
  %v416 = vshrl.u32 %v415, 7
  %v417 = vsub.s32 1, %v416
  %v418 = vrot.slane %v407, %v417
  %422 = vset.pattern.permute.xlu0 0
  %423 = vperm.xlu0 %422, %v409
  %v424 = vpop.permute.xlu0 %423
  %v426 = vmul.f32 %v414, %v424
  %v427 = vmul.f32 %v418, %v424
  %v428 = vadd.f32 %v404, %v426
  %v429 = vadd.f32 %v405, %v427
  %s430 = scalar_lea.vmem [#allocation3], 2
  %v431 = vld [vmem:[%s430] ss:$8 sm:$0x3]
  %s432 = scalar_lea.vmem %s3, 8
  %v433 = vld [vmem:[%s432] sm:$0xf]
  %v435 = vlaneseq
  %v436 = vshrl.u32 %v435, 7
  %v437 = vsub.s32 0, %v436
  %v438 = vrot.slane %v431, %v437
  %v439 = vlaneseq
  %v440 = vshrl.u32 %v439, 7
  %v441 = vsub.s32 1, %v440
  %v442 = vrot.slane %v431, %v441
  %446 = vset.pattern.permute.xlu0 0
  %447 = vperm.xlu0 %446, %v433
  %v448 = vpop.permute.xlu0 %447
  %v450 = vmul.f32 %v438, %v448
  %v451 = vmul.f32 %v442, %v448
  %v452 = vadd.f32 %v428, %v450
  %v453 = vadd.f32 %v429, %v451
  %s454 = scalar_lea.vmem [#allocation3], 3
  %v455 = vld [vmem:[%s454] ss:$8 sm:$0x3]
  %s456 = scalar_lea.vmem %s3, 12
  %v457 = vld [vmem:[%s456] sm:$0xf]
  %v459 = vlaneseq
  %v460 = vshrl.u32 %v459, 7
  %v461 = vsub.s32 0, %v460
  %v462 = vrot.slane %v455, %v461
  %v463 = vlaneseq
  %v464 = vshrl.u32 %v463, 7
  %v465 = vsub.s32 1, %v464
  %v466 = vrot.slane %v455, %v465
  %470 = vset.pattern.permute.xlu0 0
  %471 = vperm.xlu0 %470, %v457
  %v472 = vpop.permute.xlu0 %471
  %v474 = vmul.f32 %v462, %v472
  %v475 = vmul.f32 %v466, %v472
  %v476 = vadd.f32 %v452, %v474
  %v477 = vadd.f32 %v453, %v475
  %v478 = vld [vmem:[%s0] sm:$0xf]
  %v479 = vld [vmem:[%s0 + $0x8] sm:$0xf]
  %v480 = vadd.f32 %v476, %v478
  %v481 = vadd.f32 %v477, %v479
  %v482 = vmax.f32 %v480, 0.0
  %v483 = vmax.f32 %v481, 0.0
  %484 = vst [vmem:[%s6] sm:$0xf] %v482
  %485 = vst [vmem:[%s6 + $0x8] sm:$0xf] %v483
  %s486 = scalar_lea.vmem [#allocation3], 4
  %v487 = vld [vmem:[%s486] ss:$8 sm:$0x3]
  %v488 = vld [vmem:[%s3] sm:$0xf]
  %v490 = vlaneseq
  %v491 = vshrl.u32 %v490, 7
  %v492 = vsub.s32 0, %v491
  %v493 = vrot.slane %v487, %v492
  %v494 = vlaneseq
  %v495 = vshrl.u32 %v494, 7
  %v496 = vsub.s32 1, %v495
  %v497 = vrot.slane %v487, %v496
  %501 = vset.pattern.permute.xlu0 0
  %502 = vperm.xlu0 %501, %v488
  %v503 = vpop.permute.xlu0 %502
  %v505 = vmul.f32 %v493, %v503
  %v506 = vmul.f32 %v497, %v503
  %v507 = vadd.f32 %v382, %v505
  %v508 = vadd.f32 %v382, %v506
  %s509 = scalar_lea.vmem [#allocation3], 5
  %v510 = vld [vmem:[%s509] ss:$8 sm:$0x3]
  %v511 = vld [vmem:[%s408] sm:$0xf]
  %v513 = vlaneseq
  %v514 = vshrl.u32 %v513, 7
  %v515 = vsub.s32 0, %v514
  %v516 = vrot.slane %v510, %v515
  %v517 = vlaneseq
  %v518 = vshrl.u32 %v517, 7
  %v519 = vsub.s32 1, %v518
  %v520 = vrot.slane %v510, %v519
  %524 = vset.pattern.permute.xlu0 0
  %525 = vperm.xlu0 %524, %v511
  %v526 = vpop.permute.xlu0 %525
  %v528 = vmul.f32 %v516, %v526
  %v529 = vmul.f32 %v520, %v526
  %v530 = vadd.f32 %v507, %v528
  %v531 = vadd.f32 %v508, %v529
  %s532 = scalar_lea.vmem [#allocation3], 6
  %v533 = vld [vmem:[%s532] ss:$8 sm:$0x3]
  %v534 = vld [vmem:[%s432] sm:$0xf]
  %v536 = vlaneseq
  %v537 = vshrl.u32 %v536, 7
  %v538 = vsub.s32 0, %v537
  %v539 = vrot.slane %v533, %v538
  %v540 = vlaneseq
  %v541 = vshrl.u32 %v540, 7
  %v542 = vsub.s32 1, %v541
  %v543 = vrot.slane %v533, %v542
  %547 = vset.pattern.permute.xlu0 0
  %548 = vperm.xlu0 %547, %v534
  %v549 = vpop.permute.xlu0 %548
  %v551 = vmul.f32 %v539, %v549
  %v552 = vmul.f32 %v543, %v549
  %v553 = vadd.f32 %v530, %v551
  %v554 = vadd.f32 %v531, %v552
  %s555 = scalar_lea.vmem [#allocation3], 7
  %v556 = vld [vmem:[%s555] ss:$8 sm:$0x3]
  %v557 = vld [vmem:[%s456] sm:$0xf]
  %v559 = vlaneseq
  %v560 = vshrl.u32 %v559, 7
  %v561 = vsub.s32 0, %v560
  %v562 = vrot.slane %v556, %v561
  %v563 = vlaneseq
  %v564 = vshrl.u32 %v563, 7
  %v565 = vsub.s32 1, %v564
  %v566 = vrot.slane %v556, %v565
  %570 = vset.pattern.permute.xlu0 0
  %571 = vperm.xlu0 %570, %v557
  %v572 = vpop.permute.xlu0 %571
  %v574 = vmul.f32 %v562, %v572
  %v575 = vmul.f32 %v566, %v572
  %v576 = vadd.f32 %v553, %v574
  %v577 = vadd.f32 %v554, %v575
  %v578 = vld [vmem:[%s0] sm:$0xf0]
  %v579 = vld [vmem:[%s0 + $0x8] sm:$0xf0]
  %v582 = vrot.slane %v578, 4
  %v583 = vrot.slane %v579, 4
  %v586 = vadd.f32 %v576, %v582
  %v587 = vadd.f32 %v577, %v583
  %v588 = vmax.f32 %v586, 0.0
  %v589 = vmax.f32 %v587, 0.0
  %v592 = vrot.slane %v588, 4
  %v593 = vrot.slane %v589, 4
  %596 = vst [vmem:[%s6] sm:$0xf0] %v592
  %597 = vst [vmem:[%s6 + $0x8] sm:$0xf0] %v593
  // Predicated region
  $region26: #{residual_dwsep_block.1} parent=0 // pred_check
    _
  $region27: #{residual_dwsep_block.1} parent=0 // pred_check_branch
    %599 = sbr.rel (0) target = $region29
  $region28: #{residual_dwsep_block.1} parent=0 // pred_region
    _
  $region29: #{residual_dwsep_block.1} parent=0 // pred_fallthru
    _
  // Predicated region
  $region30: #{residual_dwsep_block.1} parent=0 // pred_check
    _
  $region31: #{residual_dwsep_block.1} parent=0 // pred_check_branch
    %601 = sbr.rel (0) target = $region33
  $region32: #{residual_dwsep_block.1} parent=0 // pred_region
    _
  $region33: #{residual_dwsep_block.1} parent=0 // pred_fallthru
    _

</llo_original>
